<compile_context>
chip_gen: v5e
topology: v5e:2x2
jax: 0.10.0
libtpu: 0.0.40
codegen_flags: <defaults>
</compile_context>

<pallas_src>
import jax
import jax.numpy as jnp
from jax.experimental import pallas as pl
from jax.experimental.pallas import tpu as pltpu

ALPHA = 0.25
GAMMA = 3          # matches the PyTorch module default; cubed via explicit muls
LANES = 128
NUM_CORES = 2      # v7x/megacore: 2 TCs; harmless extra sequential step on 1-TC chips


def _cdiv(a, b):
    return -(-a // b)


def _round_up(x, m):
    return ((x + m - 1) // m) * m


def _sublane_multiple(dtype):
    # Minimal sublane tile: 8 rows for 32-bit, 16 for 16-bit, 32 for 8-bit dtypes.
    return 8 * max(1, 4 // jnp.dtype(dtype).itemsize)


def _make_focal_kernel(block_rows, bpc, full_blocks, tail_elems, has_phantom,
                       binary_targets):
    """Kernel accumulating sum(focal) per core into its (8, LANES) output block."""
    assert block_rows % 8 == 0

    def fold(v):
        # (block_rows, LANES) -> (8, LANES) with pure vreg adds (VPU only);
        # the full cross-lane reduce happens once, on the host, over 2*8*128 f32.
        return jnp.sum(v.reshape(block_rows // 8, 8, LANES), axis=0)

    needs_gating = (tail_elems > 0) or has_phantom

    def kernel(x_ref, t_ref, out_ref):
        c = pl.program_id(0)   # core / parallel axis
        i = pl.program_id(1)   # per-core block index (arbitrary / reduction axis)

        @pl.when(i == 0)
        def _init():
            out_ref[...] = jnp.zeros_like(out_ref)

        x = x_ref[...].astype(jnp.float32)
        t = t_ref[...].astype(jnp.float32)

        # Numerically stable BCE-with-logits:
        #   bce = max(x, 0) - x*t + log1p(exp(-|x|))
        e = jnp.exp(-jnp.abs(x))
        bce = jnp.maximum(x, 0.0) - x * t + jnp.log1p(e)
        bce = jnp.maximum(bce, 0.0)   # guard tiny negative rounding

        if binary_targets:
            # Hard 0/1 targets: pt = sigmoid(x) if t==1 else sigmoid(-x).
            # Reuses e and replaces the second exp with a select + approx vrcp.
            num = jnp.where((t > 0.5) == (x > 0.0), 1.0, e)
            pt = num * pl.reciprocal(1.0 + e, approx=True)
        else:
            pt = jnp.exp(-bce)

        w = 1.0 - pt
        focal = (ALPHA * bce) * (w * w * w)   # gamma == 3: explicit muls (stays on VPU)

        if not needs_gating:
            # Every block is fully valid: unmasked steady-state path.
            out_ref[...] += fold(focal)
        else:
            blk = c * bpc + i   # global block index (small; never overflows int32)
            if full_blocks > 0:
                @pl.when(blk < full_blocks)
                def _full_block():
                    out_ref[...] += fold(focal)
            if tail_elems > 0:
                @pl.when(blk == full_blocks)
                def _tail_block():
                    # Block-local index -> safe even for tensors with >= 2**31 elements.
                    row = jax.lax.broadcasted_iota(jnp.int32, (block_rows, LANES), 0)
                    lane = jax.lax.broadcasted_iota(jnp.int32, (block_rows, LANES), 1)
                    idx = row * LANES + lane
                    out_ref[...] += fold(jnp.where(idx < tail_elems, focal, 0.0))
            # Phantom blocks (blk >= number of real blocks) take neither branch
            # and contribute exactly zero.

    return kernel


def focal_loss(inputs, targets, *, block_rows=2048, binary_targets=False):
    """mean(ALPHA * (1 - exp(-bce))**GAMMA * bce) with bce = BCE-with-logits.

    inputs/targets may be f32 or bf16 (kernel upcasts to f32 internally); pass
    bf16 at the call site to halve HBM traffic. `binary_targets=True` enables a
    cheaper pt path that is only valid for hard 0/1 targets.
    """
    assert inputs.shape == targets.shape
    n_total = int(inputs.size)
    assert n_total > 0

    sm = max(_sublane_multiple(inputs.dtype), _sublane_multiple(targets.dtype))
    rows = _cdiv(n_total, LANES)
    rows_min = max(rows, sm)

    br = max(sm, (int(block_rows) // sm) * sm)
    eff_br = min(br, (rows_min // sm) * sm)        # multiple of sm, <= rows_min

    num_blocks = _cdiv(rows_min, eff_br)
    bpc = _cdiv(num_blocks, NUM_CORES)             # blocks per core
    has_phantom = NUM_CORES * bpc > num_blocks

    block_elems = eff_br * LANES
    full_blocks = n_total // block_elems
    tail_elems = n_total - full_blocks * block_elems

    x_flat = inputs.reshape(-1)
    t_flat = targets.reshape(-1)
    pad = rows_min * LANES - n_total
    if pad:
        # Only up to one sublane-tile of lane padding; never padded to block size.
        x_flat = jnp.pad(x_flat, (0, pad))
        t_flat = jnp.pad(t_flat, (0, pad))
    x2d = x_flat.reshape(rows_min, LANES)
    t2d = t_flat.reshape(rows_min, LANES)

    kernel = _make_focal_kernel(eff_br, bpc, full_blocks, tail_elems,
                                has_phantom, binary_targets)

    def in_map(c, i):
        # Clamp so a phantom block (odd block count) issues a safe in-bounds DMA;
        # the kernel zeroes its contribution.
        return (jnp.minimum(c * bpc + i, num_blocks - 1), 0)

    bytes_in = n_total * (jnp.dtype(inputs.dtype).itemsize
                          + jnp.dtype(targets.dtype).itemsize)
    partials = pl.pallas_call(
        kernel,
        out_shape=jax.ShapeDtypeStruct((NUM_CORES, 8, LANES), jnp.float32),
        grid=(NUM_CORES, bpc),
        in_specs=[
            pl.BlockSpec((eff_br, LANES), in_map),
            pl.BlockSpec((eff_br, LANES), in_map),
        ],
        out_specs=pl.BlockSpec((None, 8, LANES), lambda c, i: (c, 0, 0)),
        compiler_params=pltpu.CompilerParams(
            dimension_semantics=("parallel", "arbitrary"),
        ),
        cost_estimate=pl.CostEstimate(
            flops=16 * n_total,
            transcendentals=(2 if binary_targets else 3) * n_total,
            bytes_accessed=bytes_in + NUM_CORES * 8 * LANES * 4,
        ),
    )(x2d, t2d)

    # Final tiny reduce (2 x 8 x 128 f32) + mean normalization on the host side.
    return jnp.sum(partials) / jnp.float32(n_total)


def focal_loss_ref(inputs, targets):
    x = inputs.astype(jnp.float32)
    t = targets.astype(jnp.float32)
    bce = jnp.maximum(x, 0.0) - x * t + jnp.log1p(jnp.exp(-jnp.abs(x)))
    pt = jnp.exp(-bce)
    return jnp.mean(ALPHA * (1.0 - pt) ** GAMMA * bce)


if __name__ == "__main__":
    key = jax.random.PRNGKey(0)
    k1, k2, k3, k4, k5, k6 = jax.random.split(key, 6)

    # 1) NCHW logits, lane-aligned size, single block + dual-core grid.
    shape = (2, 4, 16, 16)                        # 2048 elements = 16 rows x 128 lanes
    logits = jax.random.normal(k1, shape, dtype=jnp.float32) * 2.0
    targets = (jax.random.uniform(k2, shape) > 0.5).astype(jnp.float32)
    ref = focal_loss_ref(logits, targets)
    out = jax.block_until_ready(focal_loss(logits, targets))
    assert jnp.allclose(out, ref, rtol=1e-5, atol=1e-6), (out, ref)

    # 2) Forced multi-block grid: per-core cross-step accumulation, both cores busy.
    shape2 = (2, 8, 16, 16)                       # 4096 elements = 32 rows
    logits2 = jax.random.normal(k3, shape2, dtype=jnp.float32) * 2.0
    targets2 = (jax.random.uniform(k4, shape2) > 0.5).astype(jnp.float32)
    ref2 = focal_loss_ref(logits2, targets2)
    out2 = jax.block_until_ready(focal_loss(logits2, targets2, block_rows=8))
    assert jnp.allclose(out2, ref2, rtol=1e-5, atol=1e-6), (out2, ref2)

    # 3) Ragged shape: lane padding + partial (out-of-bounds) last block + tail mask.
    shape_r = (3, 5, 7, 11)                       # 1155 elements, not a multiple of 128
    logits_r = jax.random.normal(k5, shape_r, dtype=jnp.float32) * 2.0
    targets_r = (jax.random.uniform(k6, shape_r) > 0.5).astype(jnp.float32)
    ref_r = focal_loss_ref(logits_r, targets_r)
    out_r = jax.block_until_ready(focal_loss(logits_r, targets_r))
    assert jnp.allclose(out_r, ref_r, rtol=1e-5, atol=1e-6), (out_r, ref_r)

    # 4) bf16 inputs (half the HBM traffic); kernel upcasts to f32 internally.
    ref_bf = focal_loss_ref(logits.astype(jnp.bfloat16), targets.astype(jnp.bfloat16))
    out_bf = jax.block_until_ready(
        focal_loss(logits.astype(jnp.bfloat16), targets.astype(jnp.bfloat16)))
    assert jnp.allclose(out_bf, ref_bf, rtol=1e-4, atol=1e-5), (out_bf, ref_bf)

    # 5) Binary-target fast path: 2 transcendentals + approx reciprocal.
    out_bin = jax.block_until_ready(focal_loss(logits, targets, binary_targets=True))
    assert jnp.allclose(out_bin, ref, rtol=5e-3, atol=1e-4), (out_bin, ref)

    print("KERNEL_OK")
</pallas_src>

<mosaic_0001>
module attributes {stable_mosaic.version = 11 : i64} {
  func.func @kernel(%arg0: i32, %arg1: i32, %arg2: memref<16x128xf32, #tpu.memory_space<vmem>>, %arg3: memref<16x128xf32, #tpu.memory_space<vmem>>, %arg4: memref<1x8x128xf32, #tpu.memory_space<vmem>>) attributes {dimension_semantics = [#tpu.dimension_semantics<parallel>, #tpu.dimension_semantics<arbitrary>], iteration_bounds = array<i64: 2, 1>, scalar_prefetch = 0 : i64, scratch_operands = 0 : i64, tpu.core_type = #tpu.core_type<tc>, window_params = [{transform_indices = @transform_0, window_bounds = array<i64: 16, 128>}, {transform_indices = @transform_1, window_bounds = array<i64: 16, 128>}, {transform_indices = @transform_2, window_bounds = array<i64: 1, 8, 128>}]} {
    %c0_i32 = arith.constant 0 : i32
    %0 = arith.cmpi eq, %arg1, %c0_i32 : i32
    %1 = arith.extui %0 : i1 to i32
    %c0_i32_0 = arith.constant 0 : i32
    %2 = arith.cmpi ne, %1, %c0_i32_0 : i32
    scf.if %2 {
      %cst_11 = arith.constant 0.000000e+00 : f32
      %32 = vector.broadcast %cst_11 : f32 to vector<8x128xf32>
      %c0_12 = arith.constant 0 : index
      %c0_13 = arith.constant 0 : index
      %c0_14 = arith.constant 0 : index
      %33 = vector.load %arg4[%c0_12, %c0_13, %c0_14] : memref<1x8x128xf32, #tpu.memory_space<vmem>>, vector<1x8x128xf32>
      %34 = vector.shape_cast %33 : vector<1x8x128xf32> to vector<8x128xf32>
      %35 = vector.shape_cast %32 : vector<8x128xf32> to vector<1x8x128xf32>
      tpu.vector_store %arg4[%c0_12, %c0_13, %c0_14], %35 {strides = array<i32>} : memref<1x8x128xf32, #tpu.memory_space<vmem>>, vector<1x8x128xf32>,
    } else {
    }
    %c0 = arith.constant 0 : index
    %c0_1 = arith.constant 0 : index
    %3 = vector.load %arg2[%c0, %c0_1] : memref<16x128xf32, #tpu.memory_space<vmem>>, vector<16x128xf32>
    %c0_2 = arith.constant 0 : index
    %c0_3 = arith.constant 0 : index
    %4 = vector.load %arg3[%c0_2, %c0_3] : memref<16x128xf32, #tpu.memory_space<vmem>>, vector<16x128xf32>
    %5 = math.absf %3 : vector<16x128xf32>
    %cst = arith.constant 0.000000e+00 : f32
    %6 = vector.broadcast %cst : f32 to vector<16x128xf32>
    %7 = arith.subf %6, %5 : vector<16x128xf32>
    %8 = math.exp %7 : vector<16x128xf32>
    %cst_4 = arith.constant 0.000000e+00 : f32
    %9 = vector.broadcast %cst_4 : f32 to vector<16x128xf32>
    %10 = arith.maximumf %3, %9 : vector<16x128xf32>
    %11 = arith.mulf %3, %4 : vector<16x128xf32>
    %12 = arith.subf %10, %11 : vector<16x128xf32>
    %13 = math.log1p %8 : vector<16x128xf32>
    %14 = arith.addf %12, %13 : vector<16x128xf32>
    %cst_5 = arith.constant 0.000000e+00 : f32
    %15 = vector.broadcast %cst_5 : f32 to vector<16x128xf32>
    %16 = arith.maximumf %14, %15 : vector<16x128xf32>
    %cst_6 = arith.constant 0.000000e+00 : f32
    %17 = vector.broadcast %cst_6 : f32 to vector<16x128xf32>
    %18 = arith.subf %17, %16 : vector<16x128xf32>
    %19 = math.exp %18 : vector<16x128xf32>
    %cst_7 = arith.constant 1.000000e+00 : f32
    %20 = vector.broadcast %cst_7 : f32 to vector<16x128xf32>
    %21 = arith.subf %20, %19 : vector<16x128xf32>
    %cst_8 = arith.constant 2.500000e-01 : f32
    %22 = vector.broadcast %cst_8 : f32 to vector<16x128xf32>
    %23 = arith.mulf %22, %16 : vector<16x128xf32>
    %24 = arith.mulf %21, %21 : vector<16x128xf32>
    %25 = arith.mulf %24, %21 : vector<16x128xf32>
    %26 = arith.mulf %23, %25 : vector<16x128xf32>
    %c1_i32 = arith.constant 1 : i32
    %27 = arith.muli %arg0, %c1_i32 : i32
    %28 = arith.addi %27, %arg1 : i32
    %c1_i32_9 = arith.constant 1 : i32
    %29 = arith.cmpi slt, %28, %c1_i32_9 : i32
    %30 = arith.extui %29 : i1 to i32
    %c0_i32_10 = arith.constant 0 : i32
    %31 = arith.cmpi ne, %30, %c0_i32_10 : i32
    scf.if %31 {
      %c0_11 = arith.constant 0 : index
      %c0_12 = arith.constant 0 : index
      %c0_13 = arith.constant 0 : index
      %32 = vector.load %arg4[%c0_11, %c0_12, %c0_13] : memref<1x8x128xf32, #tpu.memory_space<vmem>>, vector<1x8x128xf32>
      %33 = vector.shape_cast %32 : vector<1x8x128xf32> to vector<8x128xf32>
      %34 = vector.shape_cast %26 : vector<16x128xf32> to vector<2x8x128xf32>
      %cst_14 = arith.constant dense<0.000000e+00> : vector<8x128xf32>
      %35 = vector.multi_reduction <add>, %34, %cst_14 [0] : vector<2x8x128xf32> to vector<8x128xf32>
      %36 = arith.addf %33, %35 : vector<8x128xf32>
      %c0_15 = arith.constant 0 : index
      %c0_16 = arith.constant 0 : index
      %c0_17 = arith.constant 0 : index
      %37 = vector.load %arg4[%c0_15, %c0_16, %c0_17] : memref<1x8x128xf32, #tpu.memory_space<vmem>>, vector<1x8x128xf32>
      %38 = vector.shape_cast %37 : vector<1x8x128xf32> to vector<8x128xf32>
      %39 = vector.shape_cast %36 : vector<8x128xf32> to vector<1x8x128xf32>
      tpu.vector_store %arg4[%c0_15, %c0_16, %c0_17], %39 {strides = array<i32>} : memref<1x8x128xf32, #tpu.memory_space<vmem>>, vector<1x8x128xf32>,
    } else {
    }
    return
  }
  func.func @transform_0(%arg0: i32, %arg1: i32) -> (i32, i32) {
    %c1_i32 = arith.constant 1 : i32
    %0 = arith.muli %arg0, %c1_i32 : i32
    %1 = arith.addi %0, %arg1 : i32
    %c0_i32 = arith.constant 0 : i32
    %2 = arith.minsi %1, %c0_i32 : i32
    %c0_i32_0 = arith.constant 0 : i32
    %c0_i32_1 = arith.constant 0 : i32
    return %2, %c0_i32_0 : i32, i32
  }
  func.func @transform_1(%arg0: i32, %arg1: i32) -> (i32, i32) {
    %c1_i32 = arith.constant 1 : i32
    %0 = arith.muli %arg0, %c1_i32 : i32
    %1 = arith.addi %0, %arg1 : i32
    %c0_i32 = arith.constant 0 : i32
    %2 = arith.minsi %1, %c0_i32 : i32
    %c0_i32_0 = arith.constant 0 : i32
    %c0_i32_1 = arith.constant 0 : i32
    return %2, %c0_i32_0 : i32, i32
  }
  func.func @transform_2(%arg0: i32, %arg1: i32) -> (i32, i32, i32) {
    %c0_i32 = arith.constant 0 : i32
    %c0_i32_0 = arith.constant 0 : i32
    %c0_i32_1 = arith.constant 0 : i32
    return %arg0, %c0_i32, %c0_i32_0 : i32, i32, i32
  }
}

</mosaic_0001>

<llo_original>
// kernel: tpu_custom_call.1
$region0: #{tpu_custom_call.1}
  #allocation0 [shape = 'u32[]', space=smem, size = 0x4, offset = 0x4, fixed_abs, tag = 'smem constant byte address 0x4 - core index']
  #allocation1 [shape = 'u32[72,128]{1,0:T(1,128)}', space=vmem, size = 0x9000, scoped, tag = 'internal scratch']
  %s0 = inlined_call_operand.hbm [shape: f32[16,128], index: 0, kind: input, shape index: {}]
  %s1 = inlined_call_operand.hbm [shape: f32[16,128], index: 1, kind: input, shape index: {}]
  %s2 = inlined_call_operand.hbm [shape: f32[2,8,128], index: 2, kind: output, shape index: {}]
  %s3 = sld [smem:[#allocation0]]
  $region57: #{tpu_custom_call.1} parent=0
    _
  %s5 = ssub.s32 1, %s3
  %s6 = scalar_select 0, %s5, %s3
  $region1: #{tpu_custom_call.1} parent=0
    #allocation2 [shape = 'u8[16384]{0}', space=vmem, size = 0x4000, scoped, tag = 'input window, operand 0']
    #allocation3 [shape = 's32[2]{0}', space=sflag, size = 0x8, scoped, tag = 'scoped memory for tpu_custom_call.1']
    #allocation4 [shape = 's32[2]{0}', space=sflag, size = 0x8, scoped, tag = 'scoped memory for tpu_custom_call.1']
    #allocation5 [shape = 'u8[16384]{0}', space=vmem, size = 0x4000, scoped, tag = 'input window, operand 1']
    #allocation6 [shape = 's32[2]{0}', space=sflag, size = 0x8, scoped, tag = 'scoped memory for tpu_custom_call.1']
    #allocation7 [shape = 'u8[8192]{0}', space=vmem, size = 0x2000, scoped, tag = 'output window, operand 0']
    %7 = vsyncpa [#allocation3], 0
    %s8 = scalar_lea.sflag [#allocation3], 1
    %9 = vsyncpa %s8, 0
    %10 = vsyncpa [#allocation6], 0
    %s11 = scalar_lea.sflag [#allocation6], 1
    %12 = vsyncpa %s11, 0
    %13 = vsyncpa [#allocation4], 0
    %s14 = scalar_lea.sflag [#allocation4], 1
    %15 = vsyncpa %s14, 0
    loop: start=0, step=1, limit=4
    $region2: #{tpu_custom_call.1} parent=1 // loop_pre_header
      _
    $region3: #{tpu_custom_call.1} parent=1 // loop_header
      %s17 = sphi 0, %s21
      %p18 = scmp.ge.s32.totalorder %s17, 4
      %s24 = sphi 0, %s36
      %s25 = sphi 0, %s32
      %s26 = sphi 0, %s24
      %s27 = sphi 0, %s25
      %s28 = sphi 0, %s26
      %s29 = sphi 0, %s27
      %s45 = sphi 0, %s47
      %s48 = sphi 0, %s45
      %s49 = sphi 0, %s48
      %s65 = sphi 0, %s49
      %s77 = sphi 0, %s79
      %s80 = sphi 0, %s77
      %s81 = sphi 0, %s80
      %s97 = sphi 0, %s81
      %s103 = sphi 0, %s105
      %s106 = sphi 0, %s103
      %s107 = sphi 0, %s106
      %s123 = sphi 0, %s107
    $region4: #{tpu_custom_call.1} parent=1 // loop_header_branch
      %20 = sbr.rel (%p18) target = $region8
    $region5: #{tpu_custom_call.1} parent=1 // loop_body
      %s22 = ssub.s32 %s17, 1
      %s23 = ssub.s32 %s17, 2
      %s30 = sadd.s32 1, %s25
      %p31 = scmp.ge.s32.totalorder %s30, 1
      %s32 = scalar_select %p31, 0, %s30
      %s33 = sadd.s32 1, %s24
      %s34 = scalar_select %p31, %s33, %s24
      %p35 = scmp.ge.s32.totalorder %s34, 2
      %s36 = scalar_select %p35, 0, %s34
      %s37 = sadd.s32 %s24, %s25
      %p38 = scmp.lt.s32.totalorder %s37, 0
      %s39 = scalar_select %p38, %s37, 0
      %s40 = sadd.s32 %s36, %s32
      %p41 = scmp.lt.s32.totalorder %s40, 0
      %s42 = scalar_select %p41, %s40, 0
      %s43 = ssub.s32 %s39, %s42
      %p44 = scmp.eq.s32.totalorder %s43, 0
      %s46 = sadd.s32 %s45, 1
      %s47 = scalar_select %p44, %s45, %s46
      %p50 = pneg %p44
      %p51 = scmp.eq.s32.totalorder %s17, 1
      %p52 = por %p50, %p51
      %p53 = scmp.ne.s32.totalorder %s45, %s48
      %p54 = scmp.eq.s32.totalorder %s17, 0
      %p55 = por %p53, %p54
      %p56 = scmp.ne.s32.totalorder %s45, %s48
      %p57 = scmp.eq.s32.totalorder %s22, 1
      %p58 = por %p56, %p57
      %p59 = scmp.ne.s32.totalorder %s48, %s49
      %p60 = scmp.eq.s32.totalorder %s22, 0
      %p61 = por %p59, %p60
      %p62 = scmp.ne.s32.totalorder %s48, %s49
      %p63 = scmp.eq.s32.totalorder %s23, 1
      %p64 = por %p62, %p63
      %p66 = scmp.ne.s32.totalorder %s49, %s65
      %p67 = scmp.eq.s32.totalorder %s23, 0
      %p68 = por %p66, %p67
      %s69 = sadd.s32 %s24, %s25
      %p70 = scmp.lt.s32.totalorder %s69, 0
      %s71 = scalar_select %p70, %s69, 0
      %s72 = sadd.s32 %s36, %s32
      %p73 = scmp.lt.s32.totalorder %s72, 0
      %s74 = scalar_select %p73, %s72, 0
      %s75 = ssub.s32 %s71, %s74
      %p76 = scmp.eq.s32.totalorder %s75, 0
      %s78 = sadd.s32 %s77, 1
      %s79 = scalar_select %p76, %s77, %s78
      %p82 = pneg %p76
      %p83 = scmp.eq.s32.totalorder %s17, 1
      %p84 = por %p82, %p83
      %p85 = scmp.ne.s32.totalorder %s77, %s80
      %p86 = scmp.eq.s32.totalorder %s17, 0
      %p87 = por %p85, %p86
      %p88 = scmp.ne.s32.totalorder %s77, %s80
      %p89 = scmp.eq.s32.totalorder %s22, 1
      %p90 = por %p88, %p89
      %p91 = scmp.ne.s32.totalorder %s80, %s81
      %p92 = scmp.eq.s32.totalorder %s22, 0
      %p93 = por %p91, %p92
      %p94 = scmp.ne.s32.totalorder %s80, %s81
      %p95 = scmp.eq.s32.totalorder %s23, 1
      %p96 = por %p94, %p95
      %p98 = scmp.ne.s32.totalorder %s81, %s97
      %p99 = scmp.eq.s32.totalorder %s23, 0
      %p100 = por %p98, %p99
      %s101 = ssub.s32 %s24, %s36
      %p102 = scmp.eq.s32.totalorder %s101, 0
      %s104 = sadd.s32 %s103, 1
      %s105 = scalar_select %p102, %s103, %s104
      %p108 = pneg %p102
      %p109 = scmp.eq.s32.totalorder %s17, 1
      %p110 = por %p108, %p109
      %p111 = scmp.ne.s32.totalorder %s103, %s106
      %p112 = scmp.eq.s32.totalorder %s17, 0
      %p113 = por %p111, %p112
      %p114 = scmp.ne.s32.totalorder %s103, %s106
      %p115 = scmp.eq.s32.totalorder %s22, 1
      %p116 = por %p114, %p115
      %p117 = scmp.ne.s32.totalorder %s106, %s107
      %p118 = scmp.eq.s32.totalorder %s22, 0
      %p119 = por %p117, %p118
      %p120 = scmp.ne.s32.totalorder %s106, %s107
      %p121 = scmp.eq.s32.totalorder %s23, 1
      %p122 = por %p120, %p121
      %p124 = scmp.ne.s32.totalorder %s107, %s123
      %p125 = scmp.eq.s32.totalorder %s23, 0
      %p126 = por %p124, %p125
      %p127 = scmp.le.s32.totalorder 1, %s17
      %p128 = scmp.lt.s32.totalorder %s17, 3
      %p129 = pnand %p127, %p128
      %p130 = pneg %p129
      // Predicated region
      $region9: #{tpu_custom_call.1} parent=5 // pred_check
        _
      $region10: #{tpu_custom_call.1} parent=5 // pred_check_branch
        %132 = sbr.rel (%p129) target = $region12
      $region11: #{tpu_custom_call.1} parent=5 // pred_region
        %s133 = ssub.s32 %s17, 1
      $region12: #{tpu_custom_call.1} parent=5 // pred_fallthru
        _
      %p134 = scmp.lt.s32.totalorder %s17, 2
      // Predicated region
      $region13: #{tpu_custom_call.1} parent=5 // pred_check
        %p135 = pneg %p134
      $region14: #{tpu_custom_call.1} parent=5 // pred_check_branch
        %137 = sbr.rel (%p135) target = $region16
      $region15: #{tpu_custom_call.1} parent=5 // pred_region
        // Predicated region
        $region17: #{tpu_custom_call.1} parent=15 // pred_check
          %p138 = pneg %p55
        $region18: #{tpu_custom_call.1} parent=15 // pred_check_branch
          %140 = sbr.rel (%p138) target = $region20
        $region19: #{tpu_custom_call.1} parent=15 // pred_region
          %s141 = sand.u32 %s45, 1
          %s142 = scalar_lea.sflag [#allocation3], %s141
          %s143 = sand.u32 %s45, 1
          %s144 = smul.addr %s143, 16
          %s145 = scalar_lea.vmem [#allocation2], %s144
          %s146 = sadd.s32 %s24, %s25
          %p147 = scmp.lt.s32.totalorder %s146, 0
          %s148 = scalar_select %p147, %s146, 0
          %s149 = smul.u32 2, %s148
          %151 = vsyncadd %s142, 0
          %s152 = smul.addr %s149, 8
          %s153 = scalar_lea.hbm %s0, %s152
          %s154 = sshll.u32 %s153, 4
          %s155 = int_to_ptr.hbm [resolvable:$true] %s154
          %s156 = sshll.u32 %s145, 4
          %s157 = int_to_ptr.vmem [resolvable:$true] %s156
          %162 = dma.hbm_to_vmem [thread:$0]  %s155, 256, %s157, %s142, 128, 128, 8
        $region20: #{tpu_custom_call.1} parent=15 // pred_fallthru
          _
        // Predicated region
        $region21: #{tpu_custom_call.1} parent=15 // pred_check
          %p163 = pneg %p87
        $region22: #{tpu_custom_call.1} parent=15 // pred_check_branch
          %165 = sbr.rel (%p163) target = $region24
        $region23: #{tpu_custom_call.1} parent=15 // pred_region
          %s166 = sand.u32 %s77, 1
          %s167 = scalar_lea.sflag [#allocation6], %s166
          %s168 = sand.u32 %s77, 1
          %s169 = smul.addr %s168, 16
          %s170 = scalar_lea.vmem [#allocation5], %s169
          %s171 = sadd.s32 %s24, %s25
          %p172 = scmp.lt.s32.totalorder %s171, 0
          %s173 = scalar_select %p172, %s171, 0
          %s174 = smul.u32 2, %s173
          %176 = vsyncadd %s167, 0
          %s177 = smul.addr %s174, 8
          %s178 = scalar_lea.hbm %s1, %s177
          %s179 = sshll.u32 %s178, 4
          %s180 = int_to_ptr.hbm [resolvable:$true] %s179
          %s181 = sshll.u32 %s170, 4
          %s182 = int_to_ptr.vmem [resolvable:$true] %s181
          %187 = dma.hbm_to_vmem [thread:$0]  %s180, 256, %s182, %s167, 128, 128, 8
        $region24: #{tpu_custom_call.1} parent=15 // pred_fallthru
          _
      $region16: #{tpu_custom_call.1} parent=5 // pred_fallthru
        _
      %p188 = scmp.le.s32.totalorder 1, %s17
      %p189 = scmp.lt.s32.totalorder %s17, 3
      %p190 = pnand %p188, %p189
      %p191 = pneg %p190
      // Predicated region
      $region25: #{tpu_custom_call.1} parent=5 // pred_check
        _
      $region26: #{tpu_custom_call.1} parent=5 // pred_check_branch
        %193 = sbr.rel (%p190) target = $region28
      $region27: #{tpu_custom_call.1} parent=5 // pred_region
        %s194 = ssub.s32 %s17, 1
        %s195 = sand.u32 %s48, 1
        %s196 = scalar_lea.sflag [#allocation3], %s195
        %s197 = sand.u32 %s48, 1
        %s198 = smul.addr %s197, 16
        %s199 = scalar_lea.vmem [#allocation2], %s198
        // Predicated region
        $region29: #{tpu_custom_call.1} parent=27 // pred_check
          %p200 = pneg %p61
        $region30: #{tpu_custom_call.1} parent=27 // pred_check_branch
          %202 = sbr.rel (%p200) target = $region32
        $region31: #{tpu_custom_call.1} parent=27 // pred_region
          %204 = dma.done %s196, 256
        $region32: #{tpu_custom_call.1} parent=27 // pred_fallthru
          _
        %s205 = sand.u32 %s80, 1
        %s206 = scalar_lea.sflag [#allocation6], %s205
        %s207 = sand.u32 %s80, 1
        %s208 = smul.addr %s207, 16
        %s209 = scalar_lea.vmem [#allocation5], %s208
        // Predicated region
        $region33: #{tpu_custom_call.1} parent=27 // pred_check
          %p210 = pneg %p93
        $region34: #{tpu_custom_call.1} parent=27 // pred_check_branch
          %212 = sbr.rel (%p210) target = $region36
        $region35: #{tpu_custom_call.1} parent=27 // pred_region
          %214 = dma.done %s206, 256
        $region36: #{tpu_custom_call.1} parent=27 // pred_fallthru
          _
        %s215 = sand.u32 %s48, 1
        %s216 = scalar_lea.sflag [#allocation3], %s215
        %s217 = sand.u32 %s48, 1
        %s218 = smul.addr %s217, 16
        %s219 = scalar_lea.vmem [#allocation2], %s218
        %p220 = pneg %p61
        %p221 = pneg %p58
        %s222 = sand.u32 %s80, 1
        %s223 = scalar_lea.sflag [#allocation6], %s222
        %s224 = sand.u32 %s80, 1
        %s225 = smul.addr %s224, 16
        %s226 = scalar_lea.vmem [#allocation5], %s225
        %p227 = pneg %p93
        %p228 = pneg %p90
        %p229 = pneg %p119
        %p230 = pneg %p116
        %s231 = sand.u32 %s106, 1
        %s232 = scalar_lea.sflag [#allocation4], %s231
        %s233 = sand.u32 %s106, 1
        %s234 = smul.addr %s233, 8
        %s235 = scalar_lea.vmem [#allocation7], %s234
        %s236 = sadd.s32 %s26, %s27
        %p237 = scmp.lt.s32.totalorder %s236, 0
        %s238 = scalar_select %p237, %s236, 0
        %s239 = smul.u32 2, %s238
        %s240 = sadd.s32 %s26, %s27
        %p241 = scmp.lt.s32.totalorder %s240, 0
        %s242 = scalar_select %p241, %s240, 0
        %s243 = smul.u32 2, %s242
        %p244 = scmp.eq.s32.totalorder %s27, 0
        // Predicated region
        $region37: #{tpu_custom_call.1} parent=27 // pred_check
          %p245 = pneg %p244
        $region38: #{tpu_custom_call.1} parent=27 // pred_check_branch
          %247 = sbr.rel (%p245) target = $region40
        $region39: #{tpu_custom_call.1} parent=27 // pred_region
          %248 = vst [vmem:[%s235] sm:$0xff] 0.0
        $region40: #{tpu_custom_call.1} parent=27 // pred_fallthru
          _
        %v249 = vld [vmem:[%s199] sm:$0xff]
        %v250 = vld [vmem:[%s199 + $0x8] sm:$0xff]
        %v251 = vld [vmem:[%s209] sm:$0xff]
        %v252 = vld [vmem:[%s209 + $0x8] sm:$0xff]
        %v253 = vand.u32 2147483647, %v249
        %v254 = vand.u32 2147483647, %v250
        %v255 = vsub.f32 0.0, %v253
        %v256 = vsub.f32 0.0, %v254
        %v257 = vmul.f32 %v255, 1.442695
        %v258 = vpow.pop %v257
        %v259 = vmul.f32 %v256, 1.442695
        %v260 = vpow.pop %v259
        %v261 = vmax.f32 %v249, 0.0
        %v262 = vmax.f32 %v250, 0.0
        %v263 = vmul.f32 %v249, %v251
        %v264 = vmul.f32 %v250, %v252
        %v265 = vsub.f32 %v261, %v263
        %v266 = vsub.f32 %v262, %v264
        %v267 = vadd.f32 %v258, 1.0
        %v268 = vlog2.pop %v267
        %v269 = vmul.f32 %v268, 0.6931472
        %v270 = vmul.f32 -0.5, %v258
        %v271 = vadd.f32 %v270, 1.0
        %v272 = vmul.f32 %v271, %v258
        %v273 = vand.u32 2147483647, %v258
        %vm274 = vcmp.lt.f32.partialorder %v273, 0.0004427343
        %v275 = vsel %vm274, %v272, %v269
        %v276 = vadd.f32 %v260, 1.0
        %v277 = vlog2.pop %v276
        %v278 = vmul.f32 %v277, 0.6931472
        %v279 = vmul.f32 -0.5, %v260
        %v280 = vadd.f32 %v279, 1.0
        %v281 = vmul.f32 %v280, %v260
        %v282 = vand.u32 2147483647, %v260
        %vm283 = vcmp.lt.f32.partialorder %v282, 0.0004427343
        %v284 = vsel %vm283, %v281, %v278
        %v285 = vadd.f32 %v265, %v275
        %v286 = vadd.f32 %v266, %v284
        %v287 = vmax.f32 %v285, 0.0
        %v288 = vmax.f32 %v286, 0.0
        %v289 = vsub.f32 0.0, %v287
        %v290 = vsub.f32 0.0, %v288
        %v291 = vmul.f32 %v289, 1.442695
        %v292 = vpow.pop %v291
        %v293 = vmul.f32 %v290, 1.442695
        %v294 = vpow.pop %v293
        %v295 = vsub.f32 1.0, %v292
        %v296 = vsub.f32 1.0, %v294
        %v297 = vmul.f32 %v287, 0.25
        %v298 = vmul.f32 %v288, 0.25
        %v299 = vmul.f32 %v295, %v295
        %v300 = vmul.f32 %v296, %v296
        %v301 = vmul.f32 %v299, %v295
        %v302 = vmul.f32 %v300, %v296
        %v303 = vmul.f32 %v297, %v301
        %v304 = vmul.f32 %v298, %v302
        %s305 = sadd.s32 %s26, %s27
        %p306 = scmp.lt.s32.totalorder %s305, 1
        // Predicated region
        $region41: #{tpu_custom_call.1} parent=27 // pred_check
          %p307 = pneg %p306
        $region42: #{tpu_custom_call.1} parent=27 // pred_check_branch
          %309 = sbr.rel (%p307) target = $region44
        $region43: #{tpu_custom_call.1} parent=27 // pred_region
          %v310 = vld [vmem:[%s235] sm:$0xff]
          %v311 = vadd.f32 %v303, %v304
          %v312 = vadd.f32 %v310, %v311
          %313 = vst [vmem:[%s235] sm:$0xff] %v312
        $region44: #{tpu_custom_call.1} parent=27 // pred_fallthru
          _
        %s314 = sand.u32 %s106, 1
        %s315 = scalar_lea.sflag [#allocation4], %s314
        %s316 = sand.u32 %s106, 1
        %s317 = smul.addr %s316, 8
        %s318 = scalar_lea.vmem [#allocation7], %s317
        // Predicated region
        $region45: #{tpu_custom_call.1} parent=27 // pred_check
          %p319 = pneg %p116
        $region46: #{tpu_custom_call.1} parent=27 // pred_check_branch
          %321 = sbr.rel (%p319) target = $region48
        $region47: #{tpu_custom_call.1} parent=27 // pred_region
          %323 = vsyncadd %s315, 0
          %s324 = smul.addr %s26, 8
          %s325 = scalar_lea.hbm %s2, %s324
          %s327 = sshll.u32 %s318, 4
          %s328 = int_to_ptr.vmem [resolvable:$true] %s327
          %s329 = sshll.u32 %s325, 4
          %s330 = int_to_ptr.hbm [resolvable:$true] %s329
          %332 = dma.vmem_to_hbm [thread:$0]  %s328, 128, %s330, %s315
        $region48: #{tpu_custom_call.1} parent=27 // pred_fallthru
          _
      $region28: #{tpu_custom_call.1} parent=5 // pred_fallthru
        _
      %p333 = scmp.le.s32.totalorder 2, %s17
      // Predicated region
      $region49: #{tpu_custom_call.1} parent=5 // pred_check
        %p334 = pneg %p333
      $region50: #{tpu_custom_call.1} parent=5 // pred_check_branch
        %336 = sbr.rel (%p334) target = $region52
      $region51: #{tpu_custom_call.1} parent=5 // pred_region
        %s337 = ssub.s32 %s17, 2
        // Predicated region
        $region53: #{tpu_custom_call.1} parent=51 // pred_check
          %p338 = pneg %p122
        $region54: #{tpu_custom_call.1} parent=51 // pred_check_branch
          %340 = sbr.rel (%p338) target = $region56
        $region55: #{tpu_custom_call.1} parent=51 // pred_region
          %s341 = sand.u32 %s107, 1
          %s342 = scalar_lea.sflag [#allocation4], %s341
          %s343 = sand.u32 %s107, 1
          %s344 = smul.addr %s343, 8
          %s345 = scalar_lea.vmem [#allocation7], %s344
          %347 = dma.done %s342, 128
        $region56: #{tpu_custom_call.1} parent=51 // pred_fallthru
          _
      $region52: #{tpu_custom_call.1} parent=5 // pred_fallthru
        _
    $region6: #{tpu_custom_call.1} parent=1 // loop_footer
      %s21 = sadd.s32 1, %s17
    $region7: #{tpu_custom_call.1} parent=1 // loop_footer_branch
      %16 = sbr.rel target = $region3
    $region8: #{tpu_custom_call.1} parent=1 // loop_exit
      _
    %348 = vsyncpa [#allocation3], 1
    %s349 = scalar_lea.sflag [#allocation3], 1
    %350 = vsyncpa %s349, 1
    %351 = vsyncpa [#allocation6], 1
    %s352 = scalar_lea.sflag [#allocation6], 1
    %353 = vsyncpa %s352, 1
    %354 = vsyncpa [#allocation4], 1
    %s355 = scalar_lea.sflag [#allocation4], 1
    %356 = vsyncpa %s355, 1

</llo_original>
